<compile_context>
chip_gen: v5e
topology: v5e:2x2
jax: 0.10.0
libtpu: 0.0.40
codegen_flags: <defaults>
</compile_context>

<pallas_src>
import functools

import jax
import jax.numpy as jnp
from jax.experimental import pallas as pl
from jax.experimental.pallas import tpu as pltpu


def _round_up(n, m):
    return ((n + m - 1) // m) * m


def _ffn_softmax_kernel(*refs, n_layers):
    """refs = (x_ref, w_0, b_0, w_1, b_1, ..., o_ref) for one batch tile.

    Weights/biases are block-index-constant across the batch grid and
    single-buffered; only the x tile and the output tile stream per grid step.
    """
    x_ref = refs[0]
    o_ref = refs[-1]
    param_refs = refs[1:-1]

    h = x_ref[...]                                  # (bt, in_pad), matmul dtype
    for i in range(n_layers):
        w = param_refs[2 * i][...]                  # (in_pad, out_pad), matmul dtype
        b = param_refs[2 * i + 1][...]              # (1, out_pad), f32
        # MXU matmul with f32 accumulation; bias add in f32.  Padded rows/cols
        # of w are zero, so the padding is exact.
        h = jnp.dot(h.astype(w.dtype), w,
                    preferred_element_type=jnp.float32) + b
        # TODO(synk): middle-layer `nn.Sigmoid(x)` branch (_bool=True) in the
        # source raises TypeError at runtime, so it has no reference semantics.

    # Module's own softmax: exp(x) / sum(exp(x), axis=1) — intentionally
    # un-stabilized to match the PyTorch source.  Padded output columns carry a
    # -1e30 bias, so exp() = 0 and they do not pollute the denominator.
    # Note: pl.reciprocal(approx=True) => rows sum to 1 only to ~1e-3.
    e = jnp.exp(h)
    denom = jnp.sum(e, axis=1, keepdims=True)
    o_ref[...] = (e * pl.reciprocal(denom, approx=True)).astype(o_ref.dtype)


def _vmem_cap_bytes():
    """Chip-aware VMEM ceiling: ~80% of physical VMEM per core."""
    try:
        phys = int(pltpu.get_tpu_info().vmem_capacity_bytes)
    except Exception:  # query unavailable -> assume the smallest (v7x, 64 MiB/TC)
        phys = 64 << 20
    return (phys * 4) // 5


def prepare_ffn_params(weights, biases, matmul_dtype=jnp.bfloat16):
    """One-time (per model) transpose / pad / cast of nn.Linear parameters.

    Weights are transposed to (in, out), zero-padded to 128-multiples, cast to
    the matmul dtype.  Biases stay f32; the LAST layer's padded columns get a
    -1e30 bias so padded logits vanish under exp() in the softmax.
    """
    n_layers = len(weights)
    dims = [weights[0].shape[1]] + [w.shape[0] for w in weights]   # layer widths
    dims_pad = [_round_up(d, 128) for d in dims]                   # MXU/lane align

    params = []
    for i, (w, b) in enumerate(zip(weights, biases)):
        w_t = jnp.asarray(w, jnp.float32).T                        # (in_i, out_i)
        wp = jnp.zeros((dims_pad[i], dims_pad[i + 1]), jnp.float32)
        wp = wp.at[:dims[i], :dims[i + 1]].set(w_t)
        params.append(wp.astype(matmul_dtype))

        pad_val = -1e30 if i == n_layers - 1 else 0.0
        bp = jnp.full((1, dims_pad[i + 1]), pad_val, jnp.float32)
        bp = bp.at[0, :dims[i + 1]].set(jnp.asarray(b, jnp.float32))
        params.append(bp)

    return dict(params=tuple(params), dims=tuple(dims), dims_pad=tuple(dims_pad),
                matmul_dtype=jnp.dtype(matmul_dtype))


def feed_forward_softmax_prepared(x, prepared, *, batch_tile=1024,
                                  out_dtype=jnp.float32):
    """Forward pass using parameters prepared once by prepare_ffn_params."""
    params = prepared["params"]
    dims = prepared["dims"]
    dims_pad = prepared["dims_pad"]
    matmul_dtype = prepared["matmul_dtype"]
    n_layers = len(params) // 2

    batch, in_n = x.shape
    assert in_n == dims[0], "input width mismatch with prepared params"
    out_n, out_pad = dims[-1], dims_pad[-1]

    # --- batch tile: 16-row aligned (bf16 sublane packing); ensure >=2 grid
    # steps when the batch allows so megacore "parallel" sharding has work for
    # v7x's second TensorCore.
    bt = min(int(batch_tile), _round_up(batch, 16))
    if batch >= 32:
        bt = min(bt, _round_up((batch + 1) // 2, 16))
    bt = _round_up(max(bt, 16), 16)

    # --- VMEM accounting: double-buffered x/out tiles, single-buffered params,
    # plus f32 activation temporaries (h per layer + e in the epilogue).
    max_w = max(dims_pad)
    param_bytes = sum(int(p.size) * p.dtype.itemsize for p in params)
    in_itemsize = jnp.dtype(matmul_dtype).itemsize
    out_itemsize = jnp.dtype(out_dtype).itemsize

    def _vmem_demand(bt_):
        b = 2 * bt_ * dims_pad[0] * in_itemsize     # double-buffered x tiles
        b += 2 * bt_ * out_pad * out_itemsize       # double-buffered out tiles
        b += param_bytes                            # weights/biases, Buffered(1)
        b += 3 * bt_ * max_w * 4                    # f32 h / e temporaries
        return b

    cap = _vmem_cap_bytes()
    while bt > 16 and _vmem_demand(bt) > cap:       # graceful tile shrink
        bt = _round_up(max(bt // 2, 16), 16)
    # TODO(synk): if padded weights alone approach the per-TC cap (v7x), add a
    # K/N grid axis with a VMEM f32 accumulator (or VMEM_SHARED weights) instead
    # of full-width resident blocks.
    vmem_limit = int(min(max(_vmem_demand(bt) + (4 << 20), 16 << 20), cap))

    batch_pad = _round_up(batch, bt)
    n_bt = batch_pad // bt

    # --- x: skip the pad/copy round-trip when already aligned.
    if batch == batch_pad and in_n == dims_pad[0]:
        xp = jnp.asarray(x).astype(matmul_dtype)
    else:
        xp = jnp.zeros((batch_pad, dims_pad[0]), matmul_dtype)
        xp = xp.at[:batch, :in_n].set(
            jnp.asarray(x, jnp.float32).astype(matmul_dtype))

    # x / out tiles stream along the batch grid; params pinned to block (0, 0)
    # and single-buffered (constant index_map -> 2nd pipeline buffer is waste).
    in_specs = [pl.BlockSpec((bt, dims_pad[0]), lambda b: (b, 0))]
    for p in params:
        in_specs.append(pl.BlockSpec(p.shape, lambda b: (0, 0),
                                     pipeline_mode=pl.Buffered(1)))
    out_specs = pl.BlockSpec((bt, out_pad), lambda b: (b, 0))

    flops = 2 * batch_pad * sum(dims_pad[i] * dims_pad[i + 1]
                                for i in range(n_layers))
    cost = pl.CostEstimate(
        flops=flops,
        transcendentals=batch_pad * out_pad,
        bytes_accessed=int(xp.size) * in_itemsize + param_bytes
                       + batch_pad * out_pad * out_itemsize)

    kernel = functools.partial(_ffn_softmax_kernel, n_layers=n_layers)

    out = pl.pallas_call(
        kernel,
        grid=(n_bt,),
        in_specs=in_specs,
        out_specs=out_specs,
        out_shape=jax.ShapeDtypeStruct((batch_pad, out_pad), out_dtype),
        compiler_params=pltpu.CompilerParams(
            dimension_semantics=("parallel",),
            vmem_limit_bytes=vmem_limit),
        cost_estimate=cost,
    )(xp, *params)

    return out[:batch, :out_n]


def feed_forward_softmax(x, weights, biases, *, batch_tile=1024,
                         matmul_dtype=jnp.bfloat16, out_dtype=jnp.float32):
    """Convenience wrapper: prepare params then run (prefer preparing once)."""
    prepared = prepare_ffn_params(weights, biases, matmul_dtype)
    return feed_forward_softmax_prepared(x, prepared, batch_tile=batch_tile,
                                         out_dtype=out_dtype)


def _init_linear_params(key, layer_sizes):
    """Deterministic nn.Linear-shaped parameters: weight (out,in), bias (out,)."""
    weights, biases = [], []
    for i in range(len(layer_sizes) - 1):
        fan_in, fan_out = layer_sizes[i], layer_sizes[i + 1]
        key, kw, kb = jax.random.split(key, 3)
        bound = 1.0 / (fan_in ** 0.5)  # PyTorch's default init range
        weights.append(jax.random.uniform(kw, (fan_out, fan_in), jnp.float32,
                                          -bound, bound))
        biases.append(jax.random.uniform(kb, (fan_out,), jnp.float32,
                                         -bound, bound))
    return weights, biases


def _reference(x, weights, biases, mm_dtype):
    """Pure-JAX reference; mm_dtype mirrors the kernel's matmul operand cast."""
    h = jnp.asarray(x, jnp.float32)
    for w, b in zip(weights, biases):
        h = jnp.dot(h.astype(mm_dtype),
                    jnp.asarray(w, jnp.float32).T.astype(mm_dtype),
                    preferred_element_type=jnp.float32) + jnp.asarray(b, jnp.float32)
    e = jnp.exp(h)
    return e / jnp.sum(e, axis=1, keepdims=True)


if __name__ == "__main__":
    key = jax.random.PRNGKey(0)
    batch, inputN, hiddenNs, outputN = 8, 32, [64], 16
    layer_sizes = [inputN] + hiddenNs + [outputN]

    kx, kp = jax.random.split(key)
    x = jax.random.normal(kx, (batch, inputN), jnp.float32)
    weights, biases = _init_linear_params(kp, layer_sizes)

    prepared = prepare_ffn_params(weights, biases)       # once per model
    out = feed_forward_softmax_prepared(x, prepared)     # hot path
    out = jax.block_until_ready(out)

    ref_bf16 = _reference(x, weights, biases, jnp.bfloat16)  # mirrors kernel math
    ref_f32 = _reference(x, weights, biases, jnp.float32)    # original f32 semantics

    assert out.shape == (batch, outputN)
    assert jnp.allclose(out, ref_bf16, atol=2e-3, rtol=2e-3)
    assert jnp.allclose(out, ref_f32, atol=3e-2)
    assert jnp.allclose(jnp.sum(out, axis=1), 1.0, atol=5e-3)

    print("KERNEL_OK")
</pallas_src>

<mosaic_0001>
module attributes {stable_mosaic.version = 11 : i64} {
  func.func @_ffn_softmax_kernel(%arg0: i32, %arg1: memref<16x128xbf16, #tpu.memory_space<vmem>>, %arg2: memref<128x128xbf16, #tpu.memory_space<vmem>>, %arg3: memref<1x128xf32, #tpu.memory_space<vmem>>, %arg4: memref<128x128xbf16, #tpu.memory_space<vmem>>, %arg5: memref<1x128xf32, #tpu.memory_space<vmem>>, %arg6: memref<16x128xf32, #tpu.memory_space<vmem>>) attributes {dimension_semantics = [#tpu.dimension_semantics<parallel>], iteration_bounds = array<i64: 1>, scalar_prefetch = 0 : i64, scratch_operands = 0 : i64, tpu.core_type = #tpu.core_type<tc>, window_params = [{transform_indices = @transform_0, window_bounds = array<i64: 16, 128>}, {pipeline_mode = #tpu.pipeline_mode<synchronous>, transform_indices = @transform_1, window_bounds = array<i64: 128, 128>}, {pipeline_mode = #tpu.pipeline_mode<synchronous>, transform_indices = @transform_2, window_bounds = array<i64: 1, 128>}, {pipeline_mode = #tpu.pipeline_mode<synchronous>, transform_indices = @transform_3, window_bounds = array<i64: 128, 128>}, {pipeline_mode = #tpu.pipeline_mode<synchronous>, transform_indices = @transform_4, window_bounds = array<i64: 1, 128>}, {transform_indices = @transform_5, window_bounds = array<i64: 16, 128>}]} {
    %c0 = arith.constant 0 : index
    %c0_0 = arith.constant 0 : index
    %0 = vector.load %arg1[%c0, %c0_0] : memref<16x128xbf16, #tpu.memory_space<vmem>>, vector<16x128xbf16>
    %c0_1 = arith.constant 0 : index
    %c0_2 = arith.constant 0 : index
    %1 = vector.load %arg2[%c0_1, %c0_2] : memref<128x128xbf16, #tpu.memory_space<vmem>>, vector<128x128xbf16>
    %c0_3 = arith.constant 0 : index
    %c0_4 = arith.constant 0 : index
    %2 = vector.load %arg3[%c0_3, %c0_4] : memref<1x128xf32, #tpu.memory_space<vmem>>, vector<1x128xf32>
    %cst = arith.constant dense<0.000000e+00> : vector<16x128xf32>
    %3 = tpu.matmul %0, %1, %cst {dimension_numbers = #tpu.dot_dimension_numbers<[1], [0], [0], [1], [0, 0, 1, 1], [], []>} : vector<16x128xbf16>, vector<128x128xbf16>, vector<16x128xf32> -> vector<16x128xf32>
    %4 = vector.broadcast %2 : vector<1x128xf32> to vector<16x128xf32>
    %5 = arith.addf %3, %4 : vector<16x128xf32>
    %c0_5 = arith.constant 0 : index
    %c0_6 = arith.constant 0 : index
    %6 = vector.load %arg4[%c0_5, %c0_6] : memref<128x128xbf16, #tpu.memory_space<vmem>>, vector<128x128xbf16>
    %c0_7 = arith.constant 0 : index
    %c0_8 = arith.constant 0 : index
    %7 = vector.load %arg5[%c0_7, %c0_8] : memref<1x128xf32, #tpu.memory_space<vmem>>, vector<1x128xf32>
    %8 = arith.truncf %5 : vector<16x128xf32> to vector<16x128xbf16>
    %cst_9 = arith.constant dense<0.000000e+00> : vector<16x128xf32>
    %9 = tpu.matmul %8, %6, %cst_9 {dimension_numbers = #tpu.dot_dimension_numbers<[1], [0], [0], [1], [0, 0, 1, 1], [], []>} : vector<16x128xbf16>, vector<128x128xbf16>, vector<16x128xf32> -> vector<16x128xf32>
    %10 = vector.broadcast %7 : vector<1x128xf32> to vector<16x128xf32>
    %11 = arith.addf %9, %10 : vector<16x128xf32>
    %12 = math.exp %11 : vector<16x128xf32>
    %cst_10 = arith.constant dense<0.000000e+00> : vector<16xf32>
    %13 = vector.multi_reduction <add>, %12, %cst_10 [1] : vector<16x128xf32> to vector<16xf32>
    %14 = vector.shape_cast %13 : vector<16xf32> to vector<16x1xf32>
    %15 = tpu.reciprocal %14 {approx = true} : vector<16x1xf32> -> vector<16x1xf32>
    %16 = vector.broadcast %15 : vector<16x1xf32> to vector<16x128xf32>
    %17 = arith.mulf %12, %16 : vector<16x128xf32>
    %c0_11 = arith.constant 0 : index
    %c0_12 = arith.constant 0 : index
    %18 = vector.load %arg6[%c0_11, %c0_12] : memref<16x128xf32, #tpu.memory_space<vmem>>, vector<16x128xf32>
    tpu.vector_store %arg6[%c0_11, %c0_12], %17 {strides = array<i32>} : memref<16x128xf32, #tpu.memory_space<vmem>>, vector<16x128xf32>,
    return
  }
  func.func @transform_0(%arg0: i32) -> (i32, i32) {
    %c0_i32 = arith.constant 0 : i32
    %c0_i32_0 = arith.constant 0 : i32
    return %arg0, %c0_i32 : i32, i32
  }
  func.func @transform_1(%arg0: i32) -> (i32, i32) {
    %c0_i32 = arith.constant 0 : i32
    %c0_i32_0 = arith.constant 0 : i32
    %c0_i32_1 = arith.constant 0 : i32
    return %c0_i32, %c0_i32_0 : i32, i32
  }
  func.func @transform_2(%arg0: i32) -> (i32, i32) {
    %c0_i32 = arith.constant 0 : i32
    %c0_i32_0 = arith.constant 0 : i32
    %c0_i32_1 = arith.constant 0 : i32
    return %c0_i32, %c0_i32_0 : i32, i32
  }
  func.func @transform_3(%arg0: i32) -> (i32, i32) {
    %c0_i32 = arith.constant 0 : i32
    %c0_i32_0 = arith.constant 0 : i32
    %c0_i32_1 = arith.constant 0 : i32
    return %c0_i32, %c0_i32_0 : i32, i32
  }
  func.func @transform_4(%arg0: i32) -> (i32, i32) {
    %c0_i32 = arith.constant 0 : i32
    %c0_i32_0 = arith.constant 0 : i32
    %c0_i32_1 = arith.constant 0 : i32
    return %c0_i32, %c0_i32_0 : i32, i32
  }
  func.func @transform_5(%arg0: i32) -> (i32, i32) {
    %c0_i32 = arith.constant 0 : i32
    %c0_i32_0 = arith.constant 0 : i32
    return %arg0, %c0_i32 : i32, i32
  }
}

</mosaic_0001>

<llo_original>
// kernel: tpu_custom_call.1
$region0: #{tpu_custom_call.1}
  #allocation0 [shape = 'u32[]', space=smem, size = 0x4, offset = 0x4, fixed_abs, tag = 'smem constant byte address 0x4 - core index']
  #allocation1 [shape = 'u32[72,128]{1,0:T(1,128)}', space=vmem, size = 0x9000, scoped, tag = 'internal scratch']
  %s0 = inlined_call_operand.hbm [shape: bf16[16,128], index: 0, kind: input, shape index: {}]
  %s1 = inlined_call_operand.hbm [shape: bf16[128,128], index: 1, kind: input, shape index: {}]
  %s2 = inlined_call_operand.vmem [shape: f32[1,128], index: 2, kind: input, shape index: {}]
  %s3 = inlined_call_operand.hbm [shape: bf16[128,128], index: 3, kind: input, shape index: {}]
  %s4 = inlined_call_operand.vmem [shape: f32[1,128], index: 4, kind: input, shape index: {}]
  %s5 = inlined_call_operand.hbm [shape: f32[16,128], index: 5, kind: output, shape index: {}]
  %s6 = sld [smem:[#allocation0]]
  $region42: #{tpu_custom_call.1} parent=0
    _
  %s8 = ssub.s32 1, %s6
  %s9 = scalar_select 0, %s8, %s6
  $region1: #{tpu_custom_call.1} parent=0
    #allocation2 [shape = 'u8[4096]{0}', space=vmem, size = 0x1000, scoped, tag = 'input window, operand 0, single buffered']
    #allocation3 [shape = 's32[1]{0}', space=sflag, size = 0x4, scoped, tag = 'scoped memory for tpu_custom_call.1']
    #allocation4 [shape = 's32[1]{0}', space=sflag, size = 0x4, scoped, tag = 'scoped memory for tpu_custom_call.1']
    #allocation5 [shape = 'u8[32768]{0}', space=vmem, size = 0x8000, scoped, tag = 'input window, operand 1, single buffered']
    #allocation6 [shape = 's32[1]{0}', space=sflag, size = 0x4, scoped, tag = 'scoped memory for tpu_custom_call.1']
    #allocation7 [shape = 'u8[32768]{0}', space=vmem, size = 0x8000, scoped, tag = 'input window, operand 3, single buffered']
    #allocation8 [shape = 'u8[8192]{0}', space=vmem, size = 0x2000, scoped, tag = 'output window, operand 0, single buffered']
    %10 = vsyncpa [#allocation3], 0
    %11 = vsyncpa [#allocation6], 0
    %12 = vsyncpa [#allocation4], 0
    // Predicated region
    $region2: #{tpu_custom_call.1} parent=1 // pred_check
      _
    $region3: #{tpu_custom_call.1} parent=1 // pred_check_branch
      %14 = sbr.rel (0) target = $region5
    $region4: #{tpu_custom_call.1} parent=1 // pred_region
      %16 = vsyncadd [#allocation3], 0
      %s17 = sshll.u32 %s0, 4
      %s18 = int_to_ptr.hbm [resolvable:$true] %s17
      %s19 = sshll.u32 [#allocation2], 4
      %s20 = int_to_ptr.vmem [resolvable:$true] %s19
      %25 = dma.hbm_to_vmem [thread:$0]  %s18, 128, %s20, [#allocation3], 64, 64, 4
    $region5: #{tpu_custom_call.1} parent=1 // pred_fallthru
      _
    // Predicated region
    $region6: #{tpu_custom_call.1} parent=1 // pred_check
      _
    $region7: #{tpu_custom_call.1} parent=1 // pred_check_branch
      %27 = sbr.rel (0) target = $region9
    $region8: #{tpu_custom_call.1} parent=1 // pred_region
      %29 = vsyncadd [#allocation6], 0
      %s30 = sshll.u32 %s1, 4
      %s31 = int_to_ptr.hbm [resolvable:$true] %s30
      %s32 = sshll.u32 [#allocation5], 4
      %s33 = int_to_ptr.vmem [resolvable:$true] %s32
      %38 = dma.hbm_to_vmem [thread:$0]  %s31, 1024, %s33, [#allocation6], 64, 64, 4
    $region9: #{tpu_custom_call.1} parent=1 // pred_fallthru
      _
    // Predicated region
    $region10: #{tpu_custom_call.1} parent=1 // pred_check
      _
    $region11: #{tpu_custom_call.1} parent=1 // pred_check_branch
      %40 = sbr.rel (0) target = $region13
    $region12: #{tpu_custom_call.1} parent=1 // pred_region
      _
    $region13: #{tpu_custom_call.1} parent=1 // pred_fallthru
      _
    // Predicated region
    $region14: #{tpu_custom_call.1} parent=1 // pred_check
      _
    $region15: #{tpu_custom_call.1} parent=1 // pred_check_branch
      %42 = sbr.rel (0) target = $region17
    $region16: #{tpu_custom_call.1} parent=1 // pred_region
      %44 = vsyncadd [#allocation6], 0
      %s45 = sshll.u32 %s3, 4
      %s46 = int_to_ptr.hbm [resolvable:$true] %s45
      %s47 = sshll.u32 [#allocation7], 4
      %s48 = int_to_ptr.vmem [resolvable:$true] %s47
      %53 = dma.hbm_to_vmem [thread:$0]  %s46, 1024, %s48, [#allocation6], 64, 64, 4
    $region17: #{tpu_custom_call.1} parent=1 // pred_fallthru
      _
    // Predicated region
    $region18: #{tpu_custom_call.1} parent=1 // pred_check
      _
    $region19: #{tpu_custom_call.1} parent=1 // pred_check_branch
      %55 = sbr.rel (0) target = $region21
    $region20: #{tpu_custom_call.1} parent=1 // pred_region
      _
    $region21: #{tpu_custom_call.1} parent=1 // pred_fallthru
      _
    // Predicated region
    $region22: #{tpu_custom_call.1} parent=1 // pred_check
      _
    $region23: #{tpu_custom_call.1} parent=1 // pred_check_branch
      %57 = sbr.rel (0) target = $region25
    $region24: #{tpu_custom_call.1} parent=1 // pred_region
      %59 = dma.done [#allocation3], 128
    $region25: #{tpu_custom_call.1} parent=1 // pred_fallthru
      _
    // Predicated region
    $region26: #{tpu_custom_call.1} parent=1 // pred_check
      _
    $region27: #{tpu_custom_call.1} parent=1 // pred_check_branch
      %61 = sbr.rel (0) target = $region29
    $region28: #{tpu_custom_call.1} parent=1 // pred_region
      %63 = dma.done [#allocation6], 1024
    $region29: #{tpu_custom_call.1} parent=1 // pred_fallthru
      _
    // Predicated region
    $region30: #{tpu_custom_call.1} parent=1 // pred_check
      _
    $region31: #{tpu_custom_call.1} parent=1 // pred_check_branch
      %65 = sbr.rel (0) target = $region33
    $region32: #{tpu_custom_call.1} parent=1 // pred_region
      %67 = dma.done [#allocation6], 1024
    $region33: #{tpu_custom_call.1} parent=1 // pred_fallthru
      _
    %v68 = vld [vmem:[#allocation2] sm:$0xf]
    %v69 = vld [vmem:[#allocation2 + $0x4] sm:$0xf]
    %v70 = vld [vmem:[#allocation5] sm:$0xf]
    %v71 = vld [vmem:[#allocation5 + $0x4] sm:$0xf]
    %v72 = vld [vmem:[#allocation5 + $0x8] sm:$0xf]
    %v73 = vld [vmem:[#allocation5 + $0xc] sm:$0xf]
    %v74 = vld [vmem:[#allocation5 + $0x10] sm:$0xf]
    %v75 = vld [vmem:[#allocation5 + $0x14] sm:$0xf]
    %v76 = vld [vmem:[#allocation5 + $0x18] sm:$0xf]
    %v77 = vld [vmem:[#allocation5 + $0x1c] sm:$0xf]
    %v78 = vld [vmem:[#allocation5 + $0x20] sm:$0xf]
    %v79 = vld [vmem:[#allocation5 + $0x24] sm:$0xf]
    %v80 = vld [vmem:[#allocation5 + $0x28] sm:$0xf]
    %v81 = vld [vmem:[#allocation5 + $0x2c] sm:$0xf]
    %v82 = vld [vmem:[#allocation5 + $0x30] sm:$0xf]
    %v83 = vld [vmem:[#allocation5 + $0x34] sm:$0xf]
    %v84 = vld [vmem:[#allocation5 + $0x38] sm:$0xf]
    %v85 = vld [vmem:[#allocation5 + $0x3c] sm:$0xf]
    %v86 = vld [vmem:[%s2] sm:$0x1]
    %v88 = vperm.slane %v86, 0
    %v92 = vunpack.c.l.b16 %v68
    %v93 = vunpack.c.l.b16 %v69
    %v94 = vpack.c.b16 %v93, %v92
    %v112 = vunpack.c.l.b16 %v70
    %v113 = vunpack.c.l.b16 %v71
    %v114 = vunpack.c.l.b16 %v72
    %v115 = vunpack.c.l.b16 %v73
    %v116 = vunpack.c.l.b16 %v74
    %v117 = vunpack.c.l.b16 %v75
    %v118 = vunpack.c.l.b16 %v76
    %v119 = vunpack.c.l.b16 %v77
    %v120 = vunpack.c.l.b16 %v78
    %v121 = vunpack.c.l.b16 %v79
    %v122 = vunpack.c.l.b16 %v80
    %v123 = vunpack.c.l.b16 %v81
    %v124 = vunpack.c.l.b16 %v82
    %v125 = vunpack.c.l.b16 %v83
    %v126 = vunpack.c.l.b16 %v84
    %v127 = vunpack.c.l.b16 %v85
    %v128 = vpack.c.b16 %v113, %v112
    %v129 = vpack.c.b16 %v115, %v114
    %v130 = vpack.c.b16 %v117, %v116
    %v131 = vpack.c.b16 %v119, %v118
    %v132 = vpack.c.b16 %v121, %v120
    %v133 = vpack.c.b16 %v123, %v122
    %v134 = vpack.c.b16 %v125, %v124
    %v135 = vpack.c.b16 %v127, %v126
    %144 = vmatpush.bf16.msra.mxu0 %v135
    %145 = vmatpush.bf16.msra.mxu0 %v134
    %146 = vmatpush.bf16.msra.mxu0 %v133
    %147 = vmatpush.bf16.msra.mxu0 %v132
    %148 = vmatpush.bf16.msra.mxu0 %v131
    %149 = vmatpush.bf16.msra.mxu0 %v130
    %150 = vmatpush.bf16.msra.mxu0 %v129
    %151 = vmatpush.bf16.msra.mxu0 %v128
    %152 = vmatmul.bf16.gmra.mxu0 %v94
    %v153 = vpop.f32.mrf.mxu0
    %v154 = vadd.f32 %v88, %v153
    %v155 = vpop.f32.mrf.mxu0
    %v156 = vadd.f32 %v88, %v155
    %157 = vdwg.mxu0
    %v158 = vld [vmem:[#allocation7] sm:$0xf]
    %v159 = vld [vmem:[#allocation7 + $0x4] sm:$0xf]
    %v160 = vld [vmem:[#allocation7 + $0x8] sm:$0xf]
    %v161 = vld [vmem:[#allocation7 + $0xc] sm:$0xf]
    %v162 = vld [vmem:[#allocation7 + $0x10] sm:$0xf]
    %v163 = vld [vmem:[#allocation7 + $0x14] sm:$0xf]
    %v164 = vld [vmem:[#allocation7 + $0x18] sm:$0xf]
    %v165 = vld [vmem:[#allocation7 + $0x1c] sm:$0xf]
    %v166 = vld [vmem:[#allocation7 + $0x20] sm:$0xf]
    %v167 = vld [vmem:[#allocation7 + $0x24] sm:$0xf]
    %v168 = vld [vmem:[#allocation7 + $0x28] sm:$0xf]
    %v169 = vld [vmem:[#allocation7 + $0x2c] sm:$0xf]
    %v170 = vld [vmem:[#allocation7 + $0x30] sm:$0xf]
    %v171 = vld [vmem:[#allocation7 + $0x34] sm:$0xf]
    %v172 = vld [vmem:[#allocation7 + $0x38] sm:$0xf]
    %v173 = vld [vmem:[#allocation7 + $0x3c] sm:$0xf]
    %v174 = vld [vmem:[%s4] sm:$0x1]
    %v175 = vpack.c.bf16 %v156, %v154
    %v177 = vperm.slane %v174, 0
    %v195 = vunpack.c.l.b16 %v158
    %v196 = vunpack.c.l.b16 %v159
    %v197 = vunpack.c.l.b16 %v160
    %v198 = vunpack.c.l.b16 %v161
    %v199 = vunpack.c.l.b16 %v162
    %v200 = vunpack.c.l.b16 %v163
    %v201 = vunpack.c.l.b16 %v164
    %v202 = vunpack.c.l.b16 %v165
    %v203 = vunpack.c.l.b16 %v166
    %v204 = vunpack.c.l.b16 %v167
    %v205 = vunpack.c.l.b16 %v168
    %v206 = vunpack.c.l.b16 %v169
    %v207 = vunpack.c.l.b16 %v170
    %v208 = vunpack.c.l.b16 %v171
    %v209 = vunpack.c.l.b16 %v172
    %v210 = vunpack.c.l.b16 %v173
    %v211 = vpack.c.b16 %v196, %v195
    %v212 = vpack.c.b16 %v198, %v197
    %v213 = vpack.c.b16 %v200, %v199
    %v214 = vpack.c.b16 %v202, %v201
    %v215 = vpack.c.b16 %v204, %v203
    %v216 = vpack.c.b16 %v206, %v205
    %v217 = vpack.c.b16 %v208, %v207
    %v218 = vpack.c.b16 %v210, %v209
    %227 = vmatpush.bf16.msra.mxu0 %v218
    %228 = vmatpush.bf16.msra.mxu0 %v217
    %229 = vmatpush.bf16.msra.mxu0 %v216
    %230 = vmatpush.bf16.msra.mxu0 %v215
    %231 = vmatpush.bf16.msra.mxu0 %v214
    %232 = vmatpush.bf16.msra.mxu0 %v213
    %233 = vmatpush.bf16.msra.mxu0 %v212
    %234 = vmatpush.bf16.msra.mxu0 %v211
    %235 = vmatmul.bf16.gmra.mxu0 %v175
    %v236 = vpop.f32.mrf.mxu0
    %v237 = vadd.f32 %v177, %v236
    %v238 = vpop.f32.mrf.mxu0
    %v239 = vadd.f32 %v177, %v238
    %240 = vdwg.mxu0
    %v241 = vmul.f32 %v237, 1.442695
    %v242 = vpow.pop %v241
    %v243 = vmul.f32 %v239, 1.442695
    %v244 = vpow.pop %v243
    %245 = vadd.xlane.f32.xlu0 %v242
    %v246 = vpop.xlane.xlu0 %245
    %247 = vadd.xlane.f32.xlu0 %v244
    %v248 = vpop.xlane.xlu0 %247
    %v249 = vrcp.pop %v246
    %v250 = vrcp.pop %v248
    %v251 = vmul.f32 %v242, %v249
    %v252 = vmul.f32 %v244, %v250
    %253 = vst [vmem:[#allocation8] sm:$0xff] %v251
    %254 = vst [vmem:[#allocation8 + $0x8] sm:$0xff] %v252
    // Predicated region
    $region34: #{tpu_custom_call.1} parent=1 // pred_check
      _
    $region35: #{tpu_custom_call.1} parent=1 // pred_check_branch
      %256 = sbr.rel (0) target = $region37
    $region36: #{tpu_custom_call.1} parent=1 // pred_region
      %258 = vsyncadd [#allocation4], 0
      %s259 = sshll.u32 [#allocation8], 4
      %s260 = int_to_ptr.vmem [resolvable:$true] %s259
      %s261 = sshll.u32 %s5, 4
      %s262 = int_to_ptr.hbm [resolvable:$true] %s261
      %267 = dma.vmem_to_hbm [thread:$0]  %s260, 256, %s262, [#allocation4], 128, 128, 8
    $region37: #{tpu_custom_call.1} parent=1 // pred_fallthru
      _
    // Predicated region
    $region38: #{tpu_custom_call.1} parent=1 // pred_check
      _
    $region39: #{tpu_custom_call.1} parent=1 // pred_check_branch
      %269 = sbr.rel (0) target = $region41
    $region40: #{tpu_custom_call.1} parent=1 // pred_region
      %271 = dma.done [#allocation4], 256
    $region41: #{tpu_custom_call.1} parent=1 // pred_fallthru
      _
    %272 = vsyncpa [#allocation3], 1
    %273 = vsyncpa [#allocation6], 1
    %274 = vsyncpa [#allocation4], 1

</llo_original>
